<compile_context>
chip_gen: v6e
topology: v6e:2x2x1
jax: 0.10.0
libtpu: 0.0.40
codegen_flags: <defaults>
</compile_context>

<pallas_src>
import functools
import math

import jax
import jax.numpy as jnp
from jax.experimental import pallas as pl
from jax.experimental.pallas import tpu as pltpu


_TARGET_BLOCK_BYTES = 2 * 1024 * 1024   # ~2 MiB of input per grid step


def _cdiv(a, m):
    return (a + m - 1) // m


def _round_up(a, m):
    return _cdiv(a, m) * m


def _round_down(a, m):
    return (a // m) * m


# ----------------------------- Pallas kernels ------------------------------


def _ln_channels_first_kernel(x_ref, w_ref, b_ref, o_ref, *, eps, inv_c):
    """x:(Bblk, C, T)  w,b:(1, C, 1) -> normalize over the channel axis (1)."""
    x = x_ref[...].astype(jnp.float32)
    mean = jnp.sum(x, axis=1, keepdims=True) * inv_c
    q = jnp.sum(x * x, axis=1, keepdims=True) * inv_c
    var = q - mean * mean                          # biased variance (one-pass)
    inv = jax.lax.rsqrt(var + eps)
    w = w_ref[...].astype(jnp.float32)
    b = b_ref[...].astype(jnp.float32)
    o_ref[...] = ((x - mean) * inv * w + b).astype(o_ref.dtype)


def _ln_channels_last_kernel(x_ref, w_ref, b_ref, o_ref, *, eps, inv_c):
    """x:(TM, C)  w,b:(1, C) -> normalize over the last (channel) axis."""
    x = x_ref[...].astype(jnp.float32)
    mean = jnp.sum(x, axis=-1, keepdims=True) * inv_c
    q = jnp.sum(x * x, axis=-1, keepdims=True) * inv_c
    var = q - mean * mean                          # biased variance (one-pass)
    inv = jax.lax.rsqrt(var + eps)
    w = w_ref[...].astype(jnp.float32)
    b = b_ref[...].astype(jnp.float32)
    o_ref[...] = ((x - mean) * inv * w + b).astype(o_ref.dtype)


def _ln_channels_last_packed_kernel(x_ref, seg_ref, w_ref, b_ref, o_ref, *,
                                    eps, inv_c):
    """Lane-packed channels_last for C < 128.

    x:(TM, G*C) holds G rows per register row; seg:(G*C, G*C) is a constant
    block-diagonal ones matrix so `x @ seg` yields the per-group sum broadcast
    over each group's lanes (segmented reduce on the otherwise-idle MXU).
    w,b:(1, G*C) are the affine params tiled G times.
    """
    x = x_ref[...].astype(jnp.float32)
    seg = seg_ref[...]
    mean = jnp.dot(x, seg, preferred_element_type=jnp.float32) * inv_c
    q = jnp.dot(x * x, seg, preferred_element_type=jnp.float32) * inv_c
    var = q - mean * mean                          # biased variance (one-pass)
    inv = jax.lax.rsqrt(var + eps)
    o_ref[...] = ((x - mean) * inv * w_ref[...] + b_ref[...]).astype(o_ref.dtype)


# ----------------------------- Pallas wrappers ------------------------------


def layer_norm_channels_first(x, weight, bias, eps=1e-6):
    """x: (B, C, H, W) NCHW.  Normalize over C per (b, h, w) position."""
    B, C, H, W = x.shape
    HW = H * W
    itemsize = jnp.dtype(x.dtype).itemsize

    xr = x.reshape(B, C, HW)
    w3 = weight.reshape(1, C, 1)
    b3 = bias.reshape(1, C, 1)

    if C * HW * itemsize >= _TARGET_BLOCK_BYTES:
        # Tile the spatial axis lane-dense (multiple of 128); partial last
        # block handled by Pallas (masked writeback).
        pos = max(128, _TARGET_BLOCK_BYTES // (C * itemsize))
        tile = max(128, min(_round_down(pos, 128), _round_up(HW, 128)))
        bblk = 1
    else:
        # HW small: take the full spatial extent per block (equals the full
        # dim, so no 128-alignment needed) and widen along batch, while
        # keeping >= ~8 parallel grid steps for megacore when B allows it.
        tile = HW
        bblk = 1
        if B >= 8:
            want = max(1, _TARGET_BLOCK_BYTES // (C * HW * itemsize))
            bblk = max(1, min(want, B // 8))

    grid = (_cdiv(B, bblk), _cdiv(HW, tile))

    out = pl.pallas_call(
        functools.partial(_ln_channels_first_kernel, eps=eps, inv_c=1.0 / C),
        out_shape=jax.ShapeDtypeStruct((B, C, HW), x.dtype),
        grid=grid,
        in_specs=[
            pl.BlockSpec((bblk, C, tile), lambda b, j: (b, 0, j)),
            pl.BlockSpec((1, C, 1), lambda b, j: (0, 0, 0)),
            pl.BlockSpec((1, C, 1), lambda b, j: (0, 0, 0)),
        ],
        out_specs=pl.BlockSpec((bblk, C, tile), lambda b, j: (b, 0, j)),
        compiler_params=pltpu.CompilerParams(
            dimension_semantics=("parallel", "parallel")),
        cost_estimate=pl.CostEstimate(
            flops=10 * B * C * HW,
            transcendentals=B * HW,
            bytes_accessed=2 * B * C * HW * itemsize),
    )(xr, w3, b3)

    return out.reshape(B, C, H, W)


def _row_block(Mg, row_bytes):
    """Pick a row-block size: ~2 MiB per step, >= ~8 grid steps when possible."""
    tm_target = max(8, _round_down(_TARGET_BLOCK_BYTES // row_bytes, 8))
    tm_steps = max(8, _round_up(_cdiv(Mg, 8), 8))
    tm = min(tm_target, tm_steps, _round_up(Mg, 8))
    return max(8, tm)


def layer_norm_channels_last(x, weight, bias, eps=1e-6):
    """x: (..., C).  Normalize over the trailing channel dim (F.layer_norm)."""
    orig_shape = x.shape
    C = orig_shape[-1]
    M = math.prod(orig_shape[:-1]) if len(orig_shape) > 1 else 1
    itemsize = jnp.dtype(x.dtype).itemsize
    x2 = x.reshape(M, C)

    # Lane packing: put G = 128 // C rows into one 128-lane group when C < 128
    # (free contiguous reshape) -> lane-dense loads/stores, unmasked vst.
    G = 128 // C if (C < 128 and 128 % C == 0) else 1
    packed = G > 1 and M % G == 0

    if packed:
        Mg, CL = M // G, G * C
        xg = x2.reshape(Mg, CL)
        lane_grp = jnp.arange(CL) // C
        seg = (lane_grp[:, None] == lane_grp[None, :]).astype(jnp.float32)
        w2 = jnp.tile(weight.astype(jnp.float32), G).reshape(1, CL)
        b2 = jnp.tile(bias.astype(jnp.float32), G).reshape(1, CL)
    else:
        Mg, CL = M, C
        xg = x2
        w2 = weight.reshape(1, C)
        b2 = bias.reshape(1, C)

    tm = _row_block(Mg, CL * itemsize)
    grid = (_cdiv(Mg, tm),)
    cost = pl.CostEstimate(
        flops=10 * M * C,
        transcendentals=M,
        bytes_accessed=2 * M * C * itemsize)
    cparams = pltpu.CompilerParams(dimension_semantics=("parallel",))

    if packed:
        out = pl.pallas_call(
            functools.partial(_ln_channels_last_packed_kernel,
                              eps=eps, inv_c=1.0 / C),
            out_shape=jax.ShapeDtypeStruct((Mg, CL), x.dtype),
            grid=grid,
            in_specs=[
                pl.BlockSpec((tm, CL), lambda i: (i, 0)),
                pl.BlockSpec((CL, CL), lambda i: (0, 0)),
                pl.BlockSpec((1, CL), lambda i: (0, 0)),
                pl.BlockSpec((1, CL), lambda i: (0, 0)),
            ],
            out_specs=pl.BlockSpec((tm, CL), lambda i: (i, 0)),
            compiler_params=cparams,
            cost_estimate=cost,
        )(xg, seg, w2, b2)
    else:
        out = pl.pallas_call(
            functools.partial(_ln_channels_last_kernel, eps=eps, inv_c=1.0 / C),
            out_shape=jax.ShapeDtypeStruct((Mg, CL), x.dtype),
            grid=grid,
            in_specs=[
                pl.BlockSpec((tm, CL), lambda i: (i, 0)),
                pl.BlockSpec((1, CL), lambda i: (0, 0)),
                pl.BlockSpec((1, CL), lambda i: (0, 0)),
            ],
            out_specs=pl.BlockSpec((tm, CL), lambda i: (i, 0)),
            compiler_params=cparams,
            cost_estimate=cost,
        )(xg, w2, b2)

    return out.reshape(orig_shape)


def layer_norm(x, weight, bias, eps=1e-6, data_format="channels_last"):
    """Forward of the PyTorch LayerNorm module."""
    if data_format == "channels_last":
        return layer_norm_channels_last(x, weight, bias, eps=eps)
    elif data_format == "channels_first":
        return layer_norm_channels_first(x, weight, bias, eps=eps)
    else:
        raise ValueError(f"unknown data_format: {data_format}")


# ----------------------------- pure-JAX reference ----------------------------


def _ref_channels_last(x, w, b, eps):
    mean = x.mean(-1, keepdims=True)
    var = ((x - mean) ** 2).mean(-1, keepdims=True)
    return (x - mean) / jnp.sqrt(var + eps) * w + b


def _ref_channels_first(x, w, b, eps):
    mean = x.mean(1, keepdims=True)
    var = ((x - mean) ** 2).mean(1, keepdims=True)
    xn = (x - mean) / jnp.sqrt(var + eps)
    return w[None, :, None, None] * xn + b[None, :, None, None]


# ----------------------------------- main ------------------------------------


def _check(y, ref, name):
    assert y.shape == ref.shape, name
    assert bool(jnp.all(jnp.isfinite(y))), name
    err = float(jnp.max(jnp.abs(y - ref)))
    assert bool(jnp.allclose(y, ref, atol=2e-5, rtol=2e-5)), (name, err)


if __name__ == "__main__":
    key = jax.random.PRNGKey(0)
    k1, k2, k3, k4, k5, k6 = jax.random.split(key, 6)

    C = 32
    eps = 1e-6
    weight = 1.0 + 0.1 * jax.random.normal(k1, (C,), jnp.float32)
    bias = 0.1 * jax.random.normal(k2, (C,), jnp.float32)

    ln_cf = jax.jit(lambda x, w, b: layer_norm(x, w, b, eps=eps,
                                               data_format="channels_first"))
    ln_cl = jax.jit(lambda x, w, b: layer_norm(x, w, b, eps=eps,
                                               data_format="channels_last"))

    # channels_first (NCHW), as used inside the Mamba encoder.
    x_cf = jax.random.normal(k3, (2, C, 16, 16), jnp.float32)
    y_cf = jax.block_until_ready(ln_cf(x_cf, weight, bias))
    _check(y_cf, _ref_channels_first(x_cf, weight, bias, eps), "cf aligned")

    # channels_first with an unaligned spatial extent (full-HW block path).
    x_cf2 = jax.random.normal(k4, (2, C, 10, 10), jnp.float32)
    y_cf2 = jax.block_until_ready(ln_cf(x_cf2, weight, bias))
    _check(y_cf2, _ref_channels_first(x_cf2, weight, bias, eps), "cf unaligned")

    # channels_last (NHWC / F.layer_norm), lane-packed path (C=32 -> G=4).
    x_cl = jax.random.normal(k5, (2, 16, 16, C), jnp.float32)
    y_cl = jax.block_until_ready(ln_cl(x_cl, weight, bias))
    _check(y_cl, _ref_channels_last(x_cl, weight, bias, eps), "cl packed")

    # channels_last with a row count that exercises the fallback path and a
    # partial boundary block (M = 2*7*9 = 126).
    x_cl2 = jax.random.normal(k6, (2, 7, 9, C), jnp.float32)
    y_cl2 = jax.block_until_ready(ln_cl(x_cl2, weight, bias))
    _check(y_cl2, _ref_channels_last(x_cl2, weight, bias, eps), "cl fallback")

    print("KERNEL_OK")
</pallas_src>

<mosaic_0001>
module attributes {stable_mosaic.version = 11 : i64} {
  func.func @_ln_channels_first_kernel(%arg0: i32, %arg1: i32, %arg2: memref<1x32x256xf32, #tpu.memory_space<vmem>>, %arg3: memref<1x32x1xf32, #tpu.memory_space<vmem>>, %arg4: memref<1x32x1xf32, #tpu.memory_space<vmem>>, %arg5: memref<1x32x256xf32, #tpu.memory_space<vmem>>) attributes {dimension_semantics = [#tpu.dimension_semantics<parallel>, #tpu.dimension_semantics<parallel>], iteration_bounds = array<i64: 2, 1>, scalar_prefetch = 0 : i64, scratch_operands = 0 : i64, tpu.core_type = #tpu.core_type<tc>, window_params = [{transform_indices = @transform_0, window_bounds = array<i64: 1, 32, 256>}, {pipeline_mode = #tpu.pipeline_mode<synchronous>, transform_indices = @transform_1, window_bounds = array<i64: 1, 32, 1>}, {pipeline_mode = #tpu.pipeline_mode<synchronous>, transform_indices = @transform_2, window_bounds = array<i64: 1, 32, 1>}, {transform_indices = @transform_3, window_bounds = array<i64: 1, 32, 256>}]} {
    %c0 = arith.constant 0 : index
    %c0_0 = arith.constant 0 : index
    %c0_1 = arith.constant 0 : index
    %0 = vector.load %arg2[%c0, %c0_0, %c0_1] : memref<1x32x256xf32, #tpu.memory_space<vmem>>, vector<1x32x256xf32>
    %cst = arith.constant dense<0.000000e+00> : vector<1x256xf32>
    %1 = vector.multi_reduction <add>, %0, %cst [1] : vector<1x32x256xf32> to vector<1x256xf32>
    %2 = vector.shape_cast %1 : vector<1x256xf32> to vector<1x1x256xf32>
    %cst_2 = arith.constant 3.125000e-02 : f32
    %3 = vector.broadcast %cst_2 : f32 to vector<1x1x256xf32>
    %4 = arith.mulf %2, %3 : vector<1x1x256xf32>
    %5 = arith.mulf %0, %0 : vector<1x32x256xf32>
    %cst_3 = arith.constant dense<0.000000e+00> : vector<1x256xf32>
    %6 = vector.multi_reduction <add>, %5, %cst_3 [1] : vector<1x32x256xf32> to vector<1x256xf32>
    %7 = vector.shape_cast %6 : vector<1x256xf32> to vector<1x1x256xf32>
    %cst_4 = arith.constant 3.125000e-02 : f32
    %8 = vector.broadcast %cst_4 : f32 to vector<1x1x256xf32>
    %9 = arith.mulf %7, %8 : vector<1x1x256xf32>
    %10 = arith.mulf %4, %4 : vector<1x1x256xf32>
    %11 = arith.subf %9, %10 : vector<1x1x256xf32>
    %cst_5 = arith.constant 9.99999997E-7 : f32
    %12 = vector.broadcast %cst_5 : f32 to vector<1x1x256xf32>
    %13 = arith.addf %11, %12 : vector<1x1x256xf32>
    %14 = math.rsqrt %13 : vector<1x1x256xf32>
    %c0_6 = arith.constant 0 : index
    %c0_7 = arith.constant 0 : index
    %c0_8 = arith.constant 0 : index
    %15 = vector.load %arg3[%c0_6, %c0_7, %c0_8] : memref<1x32x1xf32, #tpu.memory_space<vmem>>, vector<1x32x1xf32>
    %c0_9 = arith.constant 0 : index
    %c0_10 = arith.constant 0 : index
    %c0_11 = arith.constant 0 : index
    %16 = vector.load %arg4[%c0_9, %c0_10, %c0_11] : memref<1x32x1xf32, #tpu.memory_space<vmem>>, vector<1x32x1xf32>
    %17 = vector.broadcast %4 : vector<1x1x256xf32> to vector<1x32x256xf32>
    %18 = arith.subf %0, %17 : vector<1x32x256xf32>
    %19 = vector.broadcast %14 : vector<1x1x256xf32> to vector<1x32x256xf32>
    %20 = arith.mulf %18, %19 : vector<1x32x256xf32>
    %21 = vector.broadcast %15 : vector<1x32x1xf32> to vector<1x32x256xf32>
    %22 = arith.mulf %20, %21 : vector<1x32x256xf32>
    %23 = vector.broadcast %16 : vector<1x32x1xf32> to vector<1x32x256xf32>
    %24 = arith.addf %22, %23 : vector<1x32x256xf32>
    %c0_12 = arith.constant 0 : index
    %c0_13 = arith.constant 0 : index
    %c0_14 = arith.constant 0 : index
    %25 = vector.load %arg5[%c0_12, %c0_13, %c0_14] : memref<1x32x256xf32, #tpu.memory_space<vmem>>, vector<1x32x256xf32>
    tpu.vector_store %arg5[%c0_12, %c0_13, %c0_14], %24 {strides = array<i32>} : memref<1x32x256xf32, #tpu.memory_space<vmem>>, vector<1x32x256xf32>,
    return
  }
  func.func @transform_0(%arg0: i32, %arg1: i32) -> (i32, i32, i32) {
    %c0_i32 = arith.constant 0 : i32
    %c0_i32_0 = arith.constant 0 : i32
    return %arg0, %c0_i32, %arg1 : i32, i32, i32
  }
  func.func @transform_1(%arg0: i32, %arg1: i32) -> (i32, i32, i32) {
    %c0_i32 = arith.constant 0 : i32
    %c0_i32_0 = arith.constant 0 : i32
    %c0_i32_1 = arith.constant 0 : i32
    %c0_i32_2 = arith.constant 0 : i32
    return %c0_i32, %c0_i32_0, %c0_i32_1 : i32, i32, i32
  }
  func.func @transform_2(%arg0: i32, %arg1: i32) -> (i32, i32, i32) {
    %c0_i32 = arith.constant 0 : i32
    %c0_i32_0 = arith.constant 0 : i32
    %c0_i32_1 = arith.constant 0 : i32
    %c0_i32_2 = arith.constant 0 : i32
    return %c0_i32, %c0_i32_0, %c0_i32_1 : i32, i32, i32
  }
  func.func @transform_3(%arg0: i32, %arg1: i32) -> (i32, i32, i32) {
    %c0_i32 = arith.constant 0 : i32
    %c0_i32_0 = arith.constant 0 : i32
    return %arg0, %c0_i32, %arg1 : i32, i32, i32
  }
}

</mosaic_0001>

<llo_original>
// kernel: _lambda_.1
$region0: #{_lambda_.1}
  #allocation0 [shape = 'u32[]', space=smem, size = 0x4, offset = 0x4, fixed_abs, tag = 'smem constant byte address 0x4 - core index']
  #allocation1 [shape = 'u32[144,128]{1,0:T(1,128)}', space=vmem, size = 0x12000, scoped, tag = 'internal scratch']
  %s0 = inlined_call_operand.vmem [shape: f32[2,32,256], index: 0, kind: input, shape index: {}]
  %s1 = inlined_call_operand.vmem [shape: f32[1,32,1], index: 1, kind: input, shape index: {}]
  %s2 = inlined_call_operand.vmem [shape: f32[1,32,1], index: 2, kind: input, shape index: {}]
  %s3 = inlined_call_operand.vmem [shape: f32[2,32,256], index: 3, kind: output, shape index: {}]
  %s4 = sld [smem:[#allocation0]]
  $region45: #{_lambda_.1} parent=0
    _
  %s6 = ssub.s32 1, %s4
  %s7 = scalar_select 0, %s6, %s4
  loop: start=0, step=1, limit=4
  $region2: #{_lambda_.1} parent=0 // loop_pre_header
    _
  $region3: #{_lambda_.1} parent=0 // loop_header
    %s9 = sphi 0, %s13
    %p10 = scmp.ge.s32.totalorder %s9, 4
    %s16 = sphi 0, %s28
    %s17 = sphi 0, %s24
    %s18 = sphi 0, %s16
    %s19 = sphi 0, %s17
    %s20 = sphi 0, %s18
    %s21 = sphi 0, %s19
    %s33 = sphi 0, %s35
    %s36 = sphi 0, %s33
    %s37 = sphi 0, %s36
    %s53 = sphi 0, %s37
    %s57 = sphi 0, %s57
    %s59 = sphi 0, %s57
    %s60 = sphi 0, %s59
    %s74 = sphi 0, %s60
    %s78 = sphi 0, %s78
    %s80 = sphi 0, %s78
    %s81 = sphi 0, %s80
    %s95 = sphi 0, %s81
    %s103 = sphi 0, %s105
    %s106 = sphi 0, %s103
    %s107 = sphi 0, %s106
    %s123 = sphi 0, %s107
  $region4: #{_lambda_.1} parent=0 // loop_header_branch
    %12 = sbr.rel (%p10) target = $region8
  $region5: #{_lambda_.1} parent=0 // loop_body
    %s14 = ssub.s32 %s9, 1
    %s15 = ssub.s32 %s9, 2
    %s22 = sadd.s32 1, %s17
    %p23 = scmp.ge.s32.totalorder %s22, 1
    %s24 = scalar_select %p23, 0, %s22
    %s25 = sadd.s32 1, %s16
    %s26 = scalar_select %p23, %s25, %s16
    %p27 = scmp.ge.s32.totalorder %s26, 2
    %s28 = scalar_select %p27, 0, %s26
    %s29 = ssub.s32 %s16, %s28
    %s30 = ssub.s32 %s17, %s24
    %s31 = sor.u32 %s29, %s30
    %p32 = scmp.eq.s32.totalorder %s31, 0
    %s34 = sadd.s32 %s33, 1
    %s35 = scalar_select %p32, %s33, %s34
    %p38 = pneg %p32
    %p39 = scmp.eq.s32.totalorder %s9, 1
    %p40 = por %p38, %p39
    %p41 = scmp.ne.s32.totalorder %s33, %s36
    %p42 = scmp.eq.s32.totalorder %s9, 0
    %p43 = por %p41, %p42
    %p44 = scmp.ne.s32.totalorder %s33, %s36
    %p45 = scmp.eq.s32.totalorder %s14, 1
    %p46 = por %p44, %p45
    %p47 = scmp.ne.s32.totalorder %s36, %s37
    %p48 = scmp.eq.s32.totalorder %s14, 0
    %p49 = por %p47, %p48
    %p50 = scmp.ne.s32.totalorder %s36, %s37
    %p51 = scmp.eq.s32.totalorder %s15, 1
    %p52 = por %p50, %p51
    %p54 = scmp.ne.s32.totalorder %s37, %s53
    %p55 = scmp.eq.s32.totalorder %s15, 0
    %p56 = por %p54, %p55
    %s58 = sadd.s32 %s57, 1
    %p61 = scmp.eq.s32.totalorder %s9, 1
    %p62 = scmp.ne.s32.totalorder %s57, %s59
    %p63 = scmp.eq.s32.totalorder %s9, 0
    %p64 = por %p62, %p63
    %p65 = scmp.ne.s32.totalorder %s57, %s59
    %p66 = scmp.eq.s32.totalorder %s14, 1
    %p67 = por %p65, %p66
    %p68 = scmp.ne.s32.totalorder %s59, %s60
    %p69 = scmp.eq.s32.totalorder %s14, 0
    %p70 = por %p68, %p69
    %p71 = scmp.ne.s32.totalorder %s59, %s60
    %p72 = scmp.eq.s32.totalorder %s15, 1
    %p73 = por %p71, %p72
    %p75 = scmp.ne.s32.totalorder %s60, %s74
    %p76 = scmp.eq.s32.totalorder %s15, 0
    %p77 = por %p75, %p76
    %s79 = sadd.s32 %s78, 1
    %p82 = scmp.eq.s32.totalorder %s9, 1
    %p83 = scmp.ne.s32.totalorder %s78, %s80
    %p84 = scmp.eq.s32.totalorder %s9, 0
    %p85 = por %p83, %p84
    %p86 = scmp.ne.s32.totalorder %s78, %s80
    %p87 = scmp.eq.s32.totalorder %s14, 1
    %p88 = por %p86, %p87
    %p89 = scmp.ne.s32.totalorder %s80, %s81
    %p90 = scmp.eq.s32.totalorder %s14, 0
    %p91 = por %p89, %p90
    %p92 = scmp.ne.s32.totalorder %s80, %s81
    %p93 = scmp.eq.s32.totalorder %s15, 1
    %p94 = por %p92, %p93
    %p96 = scmp.ne.s32.totalorder %s81, %s95
    %p97 = scmp.eq.s32.totalorder %s15, 0
    %p98 = por %p96, %p97
    %s99 = ssub.s32 %s16, %s28
    %s100 = ssub.s32 %s17, %s24
    %s101 = sor.u32 %s99, %s100
    %p102 = scmp.eq.s32.totalorder %s101, 0
    %s104 = sadd.s32 %s103, 1
    %s105 = scalar_select %p102, %s103, %s104
    %p108 = pneg %p102
    %p109 = scmp.eq.s32.totalorder %s9, 1
    %p110 = por %p108, %p109
    %p111 = scmp.ne.s32.totalorder %s103, %s106
    %p112 = scmp.eq.s32.totalorder %s9, 0
    %p113 = por %p111, %p112
    %p114 = scmp.ne.s32.totalorder %s103, %s106
    %p115 = scmp.eq.s32.totalorder %s14, 1
    %p116 = por %p114, %p115
    %p117 = scmp.ne.s32.totalorder %s106, %s107
    %p118 = scmp.eq.s32.totalorder %s14, 0
    %p119 = por %p117, %p118
    %p120 = scmp.ne.s32.totalorder %s106, %s107
    %p121 = scmp.eq.s32.totalorder %s15, 1
    %p122 = por %p120, %p121
    %p124 = scmp.ne.s32.totalorder %s107, %s123
    %p125 = scmp.eq.s32.totalorder %s15, 0
    %p126 = por %p124, %p125
    %p127 = scmp.le.s32.totalorder 1, %s9
    %p128 = scmp.lt.s32.totalorder %s9, 3
    %p129 = pnand %p127, %p128
    %p130 = pneg %p129
    // Predicated region
    $region9: #{_lambda_.1} parent=5 // pred_check
      _
    $region10: #{_lambda_.1} parent=5 // pred_check_branch
      %132 = sbr.rel (%p129) target = $region12
    $region11: #{_lambda_.1} parent=5 // pred_region
      %s133 = ssub.s32 %s9, 1
      // Predicated region
      $region13: #{_lambda_.1} parent=11 // pred_check
        %p134 = pneg %p70
      $region14: #{_lambda_.1} parent=11 // pred_check_branch
        %136 = sbr.rel (%p134) target = $region16
      $region15: #{_lambda_.1} parent=11 // pred_region
        _
      $region16: #{_lambda_.1} parent=11 // pred_fallthru
        _
      // Predicated region
      $region17: #{_lambda_.1} parent=11 // pred_check
        %p137 = pneg %p91
      $region18: #{_lambda_.1} parent=11 // pred_check_branch
        %139 = sbr.rel (%p137) target = $region20
      $region19: #{_lambda_.1} parent=11 // pred_region
        _
      $region20: #{_lambda_.1} parent=11 // pred_fallthru
        _
    $region12: #{_lambda_.1} parent=5 // pred_fallthru
      _
    %p140 = scmp.lt.s32.totalorder %s9, 2
    // Predicated region
    $region21: #{_lambda_.1} parent=5 // pred_check
      %p141 = pneg %p140
    $region22: #{_lambda_.1} parent=5 // pred_check_branch
      %143 = sbr.rel (%p141) target = $region24
    $region23: #{_lambda_.1} parent=5 // pred_region
      // Predicated region
      $region25: #{_lambda_.1} parent=23 // pred_check
        %p144 = pneg %p43
      $region26: #{_lambda_.1} parent=23 // pred_check_branch
        %146 = sbr.rel (%p144) target = $region28
      $region27: #{_lambda_.1} parent=23 // pred_region
        %s147 = smul.u32 2, %s17
        %p148 = scmp.lt.s32.totalorder %s16, 1
        %s149 = scalar_select %p148, %s16, 1
        %p150 = scmp.lt.s32.totalorder %s147, 1
        %s151 = scalar_select %p150, %s147, 1
        %s152 = smul.addr %s149, 8
        %s153 = sadd.s32 %s151, %s152
        %s154 = smul.addr %s153, 8
        %s155 = scalar_lea.vmem %s0, %s154
        %s156 = smul.u32 2, %s17
      $region28: #{_lambda_.1} parent=23 // pred_fallthru
        _
    $region24: #{_lambda_.1} parent=5 // pred_fallthru
      _
    %p157 = scmp.le.s32.totalorder 1, %s9
    %p158 = scmp.lt.s32.totalorder %s9, 3
    %p159 = pnand %p157, %p158
    %p160 = pneg %p159
    // Predicated region
    $region29: #{_lambda_.1} parent=5 // pred_check
      _
    $region30: #{_lambda_.1} parent=5 // pred_check_branch
      %162 = sbr.rel (%p159) target = $region32
    $region31: #{_lambda_.1} parent=5 // pred_region
      %s163 = ssub.s32 %s9, 1
      %s164 = smul.u32 2, %s19
      %p165 = scmp.lt.s32.totalorder %s18, 1
      %s166 = scalar_select %p165, %s18, 1
      %p167 = scmp.lt.s32.totalorder %s164, 1
      %s168 = scalar_select %p167, %s164, 1
      %s169 = smul.addr %s166, 8
      %s170 = sadd.s32 %s168, %s169
      %s171 = smul.addr %s170, 8
      %s172 = scalar_lea.vmem %s0, %s171
      %p173 = pneg %p49
      %p174 = pneg %p46
      %p175 = pneg %p70
      %p176 = pneg %p67
      %p177 = pneg %p91
      %p178 = pneg %p88
      %p179 = pneg %p119
      %p180 = pneg %p116
      %s181 = smul.u32 2, %s19
      %p182 = scmp.lt.s32.totalorder %s18, 1
      %s183 = scalar_select %p182, %s18, 1
      %p184 = scmp.lt.s32.totalorder %s181, 1
      %s185 = scalar_select %p184, %s181, 1
      %s186 = smul.addr %s183, 8
      %s187 = sadd.s32 %s185, %s186
      %s188 = smul.addr %s187, 8
      %s189 = scalar_lea.vmem %s3, %s188
      %s190 = smul.u32 2, %s19
      %p191 = scmp.lt.s32.totalorder %s18, 1
      %s192 = scalar_select %p191, %s18, 1
      %p193 = scmp.lt.s32.totalorder %s190, 1
      %s194 = scalar_select %p193, %s190, 1
      %s195 = smul.addr %s192, 8
      %s196 = sadd.s32 %s194, %s195
      %s197 = smul.addr %s196, 8
      %s198 = scalar_lea.vmem %s0, %s197
      %s199 = smul.u32 2, %s19
      %s200 = smul.u32 2, %s19
      %p201 = scmp.lt.s32.totalorder %s18, 1
      %s202 = scalar_select %p201, %s18, 1
      %p203 = scmp.lt.s32.totalorder %s200, 1
      %s204 = scalar_select %p203, %s200, 1
      %s205 = smul.addr %s202, 8
      %s206 = sadd.s32 %s204, %s205
      %s207 = smul.addr %s206, 8
      %s208 = scalar_lea.vmem %s3, %s207
      %s209 = smul.u32 2, %s19
      %v210 = vld [vmem:[%s198] sm:$0xff]
      %v211 = vld [vmem:[%s198 + $0x8] sm:$0xff]
      %v212 = vld [vmem:[%s198 + $0x10] sm:$0xff]
      %v213 = vld [vmem:[%s198 + $0x18] sm:$0xff]
      %v214 = vld [vmem:[%s198 + $0x20] sm:$0xff]
      %v215 = vld [vmem:[%s198 + $0x28] sm:$0xff]
      %v216 = vld [vmem:[%s198 + $0x30] sm:$0xff]
      %v217 = vld [vmem:[%s198 + $0x38] sm:$0xff]
      %v218 = vadd.f32 %v210, %v212
      %v219 = vadd.f32 %v218, %v214
      %v220 = vadd.f32 %v219, %v216
      %v221 = vrot.slane %v220, 4
      %v222 = vadd.f32 %v220, %v221
      %v223 = vrot.slane %v222, 2
      %v224 = vadd.f32 %v222, %v223
      %v225 = vrot.slane %v224, 1
      %v226 = vadd.f32 %v224, %v225
      %v227 = vadd.f32 %v211, %v213
      %v228 = vadd.f32 %v227, %v215
      %v229 = vadd.f32 %v228, %v217
      %v230 = vrot.slane %v229, 4
      %v231 = vadd.f32 %v229, %v230
      %v232 = vrot.slane %v231, 2
      %v233 = vadd.f32 %v231, %v232
      %v234 = vrot.slane %v233, 1
      %v235 = vadd.f32 %v233, %v234
      %v236 = vmul.f32 %v226, 0.03125
      %v237 = vmul.f32 %v235, 0.03125
      %v238 = vmul.f32 %v210, %v210
      %v239 = vmul.f32 %v211, %v211
      %v240 = vmul.f32 %v212, %v212
      %v241 = vmul.f32 %v213, %v213
      %v242 = vmul.f32 %v214, %v214
      %v243 = vmul.f32 %v215, %v215
      %v244 = vmul.f32 %v216, %v216
      %v245 = vmul.f32 %v217, %v217
      %v246 = vadd.f32 %v238, %v240
      %v247 = vadd.f32 %v246, %v242
      %v248 = vadd.f32 %v247, %v244
      %v249 = vrot.slane %v248, 4
      %v250 = vadd.f32 %v248, %v249
      %v251 = vrot.slane %v250, 2
      %v252 = vadd.f32 %v250, %v251
      %v253 = vrot.slane %v252, 1
      %v254 = vadd.f32 %v252, %v253
      %v255 = vadd.f32 %v239, %v241
      %v256 = vadd.f32 %v255, %v243
      %v257 = vadd.f32 %v256, %v245
      %v258 = vrot.slane %v257, 4
      %v259 = vadd.f32 %v257, %v258
      %v260 = vrot.slane %v259, 2
      %v261 = vadd.f32 %v259, %v260
      %v262 = vrot.slane %v261, 1
      %v263 = vadd.f32 %v261, %v262
      %v264 = vmul.f32 %v254, 0.03125
      %v265 = vmul.f32 %v263, 0.03125
      %v266 = vmul.f32 %v236, %v236
      %v267 = vmul.f32 %v237, %v237
      %v268 = vsub.f32 %v264, %v266
      %v269 = vsub.f32 %v265, %v267
      %v270 = vadd.f32 %v268, 1e-06
      %v271 = vadd.f32 %v269, 1e-06
      %v272 = vrsqrt.pop %v270
      %v273 = vrsqrt.pop %v271
      %v274 = vld [vmem:[%s1] sm:$0xff]
      %v275 = vld [vmem:[%s1 + $0x8] sm:$0xff]
      %v276 = vld [vmem:[%s1 + $0x10] sm:$0xff]
      %v277 = vld [vmem:[%s1 + $0x18] sm:$0xff]
      %v278 = vld [vmem:[%s2] sm:$0xff]
      %v279 = vld [vmem:[%s2 + $0x8] sm:$0xff]
      %v280 = vld [vmem:[%s2 + $0x10] sm:$0xff]
      %v281 = vld [vmem:[%s2 + $0x18] sm:$0xff]
      %v282 = vsub.f32 %v210, %v236
      %v283 = vsub.f32 %v211, %v237
      %v284 = vsub.f32 %v212, %v236
      %v285 = vsub.f32 %v213, %v237
      %v286 = vsub.f32 %v214, %v236
      %v287 = vsub.f32 %v215, %v237
      %v288 = vsub.f32 %v216, %v236
      %v289 = vsub.f32 %v217, %v237
      %v290 = vmul.f32 %v282, %v272
      %v291 = vmul.f32 %v283, %v273
      %v292 = vmul.f32 %v284, %v272
      %v293 = vmul.f32 %v285, %v273
      %v294 = vmul.f32 %v286, %v272
      %v295 = vmul.f32 %v287, %v273
      %v296 = vmul.f32 %v288, %v272
      %v297 = vmul.f32 %v289, %v273
      %299 = vset.pattern.permute.xlu0 0
      %300 = vperm.xlu0 %299, %v274
      %v301 = vpop.permute.xlu0 %300
      %304 = vset.pattern.permute.xlu0 0
      %305 = vperm.xlu0 %304, %v275
      %v306 = vpop.permute.xlu0 %305
      %309 = vset.pattern.permute.xlu0 0
      %310 = vperm.xlu0 %309, %v276
      %v311 = vpop.permute.xlu0 %310
      %314 = vset.pattern.permute.xlu0 0
      %315 = vperm.xlu0 %314, %v277
      %v316 = vpop.permute.xlu0 %315
      %v318 = vmul.f32 %v290, %v301
      %v319 = vmul.f32 %v291, %v301
      %v320 = vmul.f32 %v292, %v306
      %v321 = vmul.f32 %v293, %v306
      %v322 = vmul.f32 %v294, %v311
      %v323 = vmul.f32 %v295, %v311
      %v324 = vmul.f32 %v296, %v316
      %v325 = vmul.f32 %v297, %v316
      %327 = vset.pattern.permute.xlu0 0
      %328 = vperm.xlu0 %327, %v278
      %v329 = vpop.permute.xlu0 %328
      %332 = vset.pattern.permute.xlu0 0
      %333 = vperm.xlu0 %332, %v279
      %v334 = vpop.permute.xlu0 %333
      %337 = vset.pattern.permute.xlu0 0
      %338 = vperm.xlu0 %337, %v280
      %v339 = vpop.permute.xlu0 %338
      %342 = vset.pattern.permute.xlu0 0
      %343 = vperm.xlu0 %342, %v281
      %v344 = vpop.permute.xlu0 %343
      %v346 = vadd.f32 %v318, %v329
      %v347 = vadd.f32 %v319, %v329
      %v348 = vadd.f32 %v320, %v334
      %v349 = vadd.f32 %v321, %v334
      %v350 = vadd.f32 %v322, %v339
      %v351 = vadd.f32 %v323, %v339
      %v352 = vadd.f32 %v324, %v344
      %v353 = vadd.f32 %v325, %v344
      %354 = vst [vmem:[%s208] sm:$0xff] %v346
      %355 = vst [vmem:[%s208 + $0x8] sm:$0xff] %v347
      %356 = vst [vmem:[%s208 + $0x10] sm:$0xff] %v348
      %357 = vst [vmem:[%s208 + $0x18] sm:$0xff] %v349
      %358 = vst [vmem:[%s208 + $0x20] sm:$0xff] %v350
      %359 = vst [vmem:[%s208 + $0x28] sm:$0xff] %v351
      %360 = vst [vmem:[%s208 + $0x30] sm:$0xff] %v352
      %361 = vst [vmem:[%s208 + $0x38] sm:$0xff] %v353
      %s362 = smul.u32 2, %s19
      %p363 = scmp.lt.s32.totalorder %s18, 1
      %s364 = scalar_select %p363, %s18, 1
      %p365 = scmp.lt.s32.totalorder %s362, 1
      %s366 = scalar_select %p365, %s362, 1
      %s367 = smul.addr %s364, 8
      %s368 = sadd.s32 %s366, %s367
      %s369 = smul.addr %s368, 8
      %s370 = scalar_lea.vmem %s3, %s369
      // Predicated region
      $region33: #{_lambda_.1} parent=31 // pred_check
        %p371 = pneg %p116
      $region34: #{_lambda_.1} parent=31 // pred_check_branch
        %373 = sbr.rel (%p371) target = $region36
      $region35: #{_lambda_.1} parent=31 // pred_region
        %s374 = smul.u32 2, %s19
      $region36: #{_lambda_.1} parent=31 // pred_fallthru
        _
    $region32: #{_lambda_.1} parent=5 // pred_fallthru
      _
    %p375 = scmp.le.s32.totalorder 2, %s9
    // Predicated region
    $region37: #{_lambda_.1} parent=5 // pred_check
      %p376 = pneg %p375
    $region38: #{_lambda_.1} parent=5 // pred_check_branch
      %378 = sbr.rel (%p376) target = $region40
    $region39: #{_lambda_.1} parent=5 // pred_region
      %s379 = ssub.s32 %s9, 2
      // Predicated region
      $region41: #{_lambda_.1} parent=39 // pred_check
        %p380 = pneg %p122
      $region42: #{_lambda_.1} parent=39 // pred_check_branch
        %382 = sbr.rel (%p380) target = $region44
      $region43: #{_lambda_.1} parent=39 // pred_region
        %s383 = smul.u32 2, %s21
        %p384 = scmp.lt.s32.totalorder %s20, 1
        %s385 = scalar_select %p384, %s20, 1
        %p386 = scmp.lt.s32.totalorder %s383, 1
        %s387 = scalar_select %p386, %s383, 1
        %s388 = smul.addr %s385, 8
        %s389 = sadd.s32 %s387, %s388
        %s390 = smul.addr %s389, 8
        %s391 = scalar_lea.vmem %s3, %s390
      $region44: #{_lambda_.1} parent=39 // pred_fallthru
        _
    $region40: #{_lambda_.1} parent=5 // pred_fallthru
      _
  $region6: #{_lambda_.1} parent=0 // loop_footer
    %s13 = sadd.s32 1, %s9
  $region7: #{_lambda_.1} parent=0 // loop_footer_branch
    %8 = sbr.rel target = $region3
  $region8: #{_lambda_.1} parent=0 // loop_exit
    _

</llo_original>
